<compile_context>
chip_gen: v6e
topology: v6e:2x2x1
jax: 0.10.0
libtpu: 0.0.40
codegen_flags: <defaults>
</compile_context>

<pallas_src>
import jax
import jax.numpy as jnp
from jax.experimental import pallas as pl
from jax.experimental.pallas import tpu as pltpu


def _round_up(x, m):
    return ((x + m - 1) // m) * m


# ---------------------------------------------------------------------------
# Feature probe: single-buffered weight blocks (pipeline_mode=pl.Buffered(1)).
# Constant-index weight blocks are never re-DMA'd across batch tiles, but the
# default double buffering still allocates a dead second copy (~2.5 MiB at
# H=1024).  If this jax/Mosaic build rejects Buffered(1) we silently fall back
# to the default; correctness is unaffected either way.
# ---------------------------------------------------------------------------
def _probe_single_buffer_support():
    try:
        def _probe_kernel(w_ref, o_ref):
            o_ref[...] = w_ref[...] + 1.0

        f = pl.pallas_call(
            _probe_kernel,
            out_shape=jax.ShapeDtypeStruct((16, 128), jnp.float32),
            grid=(2,),
            in_specs=[pl.BlockSpec((8, 128), lambda i: (0, 0),
                                   pipeline_mode=pl.Buffered(1))],
            out_specs=pl.BlockSpec((8, 128), lambda i: (i, 0)),
        )
        jax.block_until_ready(f(jnp.zeros((8, 128), jnp.float32)))
        return True
    except Exception:   # any failure (old API, lowering reject, no TPU) -> fallback
        return False


_SINGLE_BUFFER_WEIGHTS = _probe_single_buffer_support()
_WEIGHT_PIPELINE_MODE = pl.Buffered(1) if _SINGLE_BUFFER_WEIGHTS else None


def _const_spec(shape):
    """Constant block index -> weight tile stays VMEM-resident across batch tiles."""
    index_map = lambda *_: (0,) * len(shape)
    if _WEIGHT_PIPELINE_MODE is not None:
        return pl.BlockSpec(shape, index_map, pipeline_mode=_WEIGHT_PIPELINE_MODE)
    return pl.BlockSpec(shape, index_map)


# ---------------------------------------------------------------------------
# Kernels
# ---------------------------------------------------------------------------
def _heads_kernel(x_ref, wp_ref, bp_ref, wh_ref, bh_ref, heads_ref):
    """Pooler (tanh) + fused [dim_reducer | classifier] heads for one batch tile.

    x_ref   : [TB, H]   CLS-token hidden states (bf16)
    wp_ref  : [H, H]    pooler weight, bf16, [in, out] layout
    bp_ref  : [1, H]    pooler bias, f32
    wh_ref  : [H, NP]   fused head weight [dim_reducer | classifier | pad], bf16
    bh_ref  : [1, NP]   fused head bias, f32
    heads_ref : [TB, NP] f32 lane-dense fused head output (only output!)
    """
    x = x_ref[...].astype(wp_ref.dtype)   # no-op when fed bf16
    # f32 accumulation + f32 bias/tanh epilogue (works on v5e as well).
    pooled = jnp.tanh(
        jnp.dot(x, wp_ref[...], preferred_element_type=jnp.float32) + bp_ref[...])
    heads_ref[...] = (
        jnp.dot(pooled.astype(wh_ref.dtype), wh_ref[...],
                preferred_element_type=jnp.float32) + bh_ref[...]
    ).astype(heads_ref.dtype)


def _pooled_kernel(x_ref, wp_ref, bp_ref, pooled_ref):
    """Pooler only (feat_classifier=True path): no dead head compute/DMA."""
    x = x_ref[...].astype(wp_ref.dtype)
    pooled_ref[...] = jnp.tanh(
        jnp.dot(x, wp_ref[...], preferred_element_type=jnp.float32) + bp_ref[...]
    ).astype(pooled_ref.dtype)


# ---------------------------------------------------------------------------
# Parameter prep (one-time, at load)
# ---------------------------------------------------------------------------
def prepare_params(w_pool, b_pool, w_cls, b_cls, w_red, b_red,
                   compute_dtype=jnp.bfloat16):
    """One-time parameter prep. Call at load time, NOT inside the jitted forward.

    PyTorch nn.Linear layout is [out, in]; transpose once to [in, out], fuse
    dim_reducer + classifier into ONE lane-dense [H, round_up(L+C,128)] weight
    (dim_reducer FIRST so both output slices are 128-lane aligned), and cast
    matmul weights to bf16 (biases stay f32 for the f32 epilogue).
    """
    H = w_pool.shape[1]
    C = w_cls.shape[0]
    L = w_red.shape[0]
    NP = _round_up(C + L, 128)

    wp = jnp.asarray(w_pool).T.astype(compute_dtype)                      # [H, H]
    bp = jnp.asarray(b_pool, jnp.float32).reshape(1, H)                   # [1, H]

    # Fused head: [dim_reducer | classifier | zero-pad]  -> [H, NP]
    w_heads = jnp.concatenate(
        [jnp.asarray(w_red, jnp.float32).T, jnp.asarray(w_cls, jnp.float32).T],
        axis=1)
    w_heads = jnp.pad(w_heads, ((0, 0), (0, NP - (C + L)))).astype(compute_dtype)
    b_heads = jnp.concatenate(
        [jnp.asarray(b_red, jnp.float32), jnp.asarray(b_cls, jnp.float32)])
    b_heads = jnp.pad(b_heads, (0, NP - (C + L))).reshape(1, NP)

    return (wp, bp, w_heads, b_heads)


# ---------------------------------------------------------------------------
# pallas_call wrappers
# ---------------------------------------------------------------------------
def _pick_batch_tile(B, requested):
    if requested is None:
        # One grid step for small/medium batches (weights DMA'd exactly once);
        # 256-row tiles for large batches to fill the v6e/v7x 256x256 MXU while
        # bounding VMEM.  v5e users can pass batch_tile=128 explicitly.
        tb = B if B <= 256 else 256
    else:
        tb = max(1, min(requested, B))
    if tb < B:
        tb = min(_round_up(tb, 8), B)   # keep (8,128)-friendly blocks
    return tb


def _cls_rows(hidden_states, compute_dtype):
    """Accept [B, S, H] encoder output or pre-sliced [B, H] CLS rows.

    The slice + bf16 cast fuse into one tiny XLA op; feeding bf16 halves the
    kernel's per-row DMA (no-op if the encoder already emits bf16).
    """
    x = hidden_states[:, 0, :] if hidden_states.ndim == 3 else hidden_states
    return x.astype(compute_dtype)


def _run_heads(x, wp, bp, wh, bh, *, batch_tile=None, vmem_limit_bytes=None):
    B, H = x.shape
    NP = wh.shape[1]
    TB = _pick_batch_tile(B, batch_tile)
    grid = (pl.cdiv(B, TB),)

    isz = lambda a: jnp.dtype(a.dtype).itemsize
    cost = pl.CostEstimate(
        flops=2 * B * H * (H + NP),
        transcendentals=B * H,
        bytes_accessed=(B * H * isz(x) + wp.size * isz(wp) + bp.size * 4
                        + wh.size * isz(wh) + bh.size * 4 + B * NP * 4),
    )

    return pl.pallas_call(
        _heads_kernel,
        out_shape=jax.ShapeDtypeStruct((B, NP), jnp.float32),
        grid=grid,
        in_specs=[
            pl.BlockSpec((TB, H), lambda i: (i, 0)),
            _const_spec((H, H)), _const_spec((1, H)),
            _const_spec((H, NP)), _const_spec((1, NP)),
        ],
        out_specs=pl.BlockSpec((TB, NP), lambda i: (i, 0)),
        compiler_params=pltpu.CompilerParams(
            dimension_semantics=("parallel",),        # v7x dual-TC sharding
            vmem_limit_bytes=vmem_limit_bytes,
        ),
        cost_estimate=cost,
    )(x, wp, bp, wh, bh)


def _run_pooled(x, wp, bp, *, batch_tile=None, vmem_limit_bytes=None):
    B, H = x.shape
    TB = _pick_batch_tile(B, batch_tile)
    grid = (pl.cdiv(B, TB),)

    isz = lambda a: jnp.dtype(a.dtype).itemsize
    cost = pl.CostEstimate(
        flops=2 * B * H * H,
        transcendentals=B * H,
        bytes_accessed=B * H * isz(x) + wp.size * isz(wp) + bp.size * 4 + B * H * 4,
    )

    return pl.pallas_call(
        _pooled_kernel,
        out_shape=jax.ShapeDtypeStruct((B, H), jnp.float32),
        grid=grid,
        in_specs=[
            pl.BlockSpec((TB, H), lambda i: (i, 0)),
            _const_spec((H, H)), _const_spec((1, H)),
        ],
        out_specs=pl.BlockSpec((TB, H), lambda i: (i, 0)),
        compiler_params=pltpu.CompilerParams(
            dimension_semantics=("parallel",),
            vmem_limit_bytes=vmem_limit_bytes,
        ),
        cost_estimate=cost,
    )(x, wp, bp)


def model_forward(hidden_states, prepared_params, *, num_classes, low_dim,
                  feat_classifier=False, batch_tile=None, vmem_limit_bytes=None):
    """Mirrors IntegrityClassificationModel.forward given encoder hidden states.

    Note: pred/contrast are computed from a bf16-rounded pooler_output inside
    the fused kernel, while feat_classifier=True returns the f32 pooler_output
    directly -- the two paths differ by one bf16 rounding (intentional).
    """
    wp, bp, wh, bh = prepared_params
    x = _cls_rows(hidden_states, wp.dtype)
    if feat_classifier:
        return _run_pooled(x, wp, bp, batch_tile=batch_tile,
                           vmem_limit_bytes=vmem_limit_bytes)
    heads = _run_heads(x, wp, bp, wh, bh, batch_tile=batch_tile,
                       vmem_limit_bytes=vmem_limit_bytes)
    # Fused head layout is [dim_reducer | classifier]; both slices start at
    # 128-lane-aligned offsets (0 and low_dim=128) -> cheap/no-copy views.
    contrast = heads[:, :low_dim]                                  # outContrast
    pred = heads[:, low_dim:low_dim + num_classes]                 # outPred
    return pred, contrast


if __name__ == "__main__":
    # Small shapes consistent with the module (num_classes=2, low_dim=128).
    B, S, H = 16, 8, 128
    NUM_CLASSES = 2
    LOW_DIM = 128

    key = jax.random.PRNGKey(0)
    k_x, k_wp, k_bp, k_wc, k_bc, k_wr, k_br = jax.random.split(key, 7)

    # Simulated encoder last_hidden_state (stand-in for xlm-roberta-large),
    # emitted in bf16 so the CLS-row DMA is half-width (perf feedback).
    hidden_states = jax.random.normal(k_x, (B, S, H),
                                      dtype=jnp.float32).astype(jnp.bfloat16)

    # Deterministic parameter init (PyTorch nn.Linear layout: [out, in]).
    scale = 0.02
    w_pool = scale * jax.random.normal(k_wp, (H, H), dtype=jnp.float32)
    b_pool = scale * jax.random.normal(k_bp, (H,), dtype=jnp.float32)
    w_cls = scale * jax.random.normal(k_wc, (NUM_CLASSES, H), dtype=jnp.float32)
    b_cls = scale * jax.random.normal(k_bc, (NUM_CLASSES,), dtype=jnp.float32)
    w_red = scale * jax.random.normal(k_wr, (LOW_DIM, H), dtype=jnp.float32)
    b_red = scale * jax.random.normal(k_br, (LOW_DIM,), dtype=jnp.float32)

    # One-time prep (transpose + head fusion + bf16 cast), outside the forward.
    prepared = prepare_params(w_pool, b_pool, w_cls, b_cls, w_red, b_red)

    forward = jax.jit(
        model_forward,
        static_argnames=("num_classes", "low_dim", "feat_classifier",
                         "batch_tile", "vmem_limit_bytes"),
    )

    # batch_tile=8 -> grid=(2,): exercises batch tiling + VMEM-resident weights.
    pred, contrast = forward(hidden_states, prepared,
                             num_classes=NUM_CLASSES, low_dim=LOW_DIM,
                             batch_tile=8)
    pooled = forward(hidden_states, prepared,
                     num_classes=NUM_CLASSES, low_dim=LOW_DIM,
                     feat_classifier=True, batch_tile=8)
    pred = jax.block_until_ready(pred)
    contrast = jax.block_until_ready(contrast)
    pooled = jax.block_until_ready(pooled)

    # --- references ---
    cls_bf16 = hidden_states[:, 0, :]                      # already bf16

    # (a) Same bf16 params / f32 accumulation as the kernel (tight check).
    wp_bf = w_pool.T.astype(jnp.bfloat16)
    wh_bf = jnp.concatenate([w_red.T, w_cls.T], axis=1).astype(jnp.bfloat16)
    bh_f = jnp.concatenate([b_red, b_cls])
    pooled_q = jnp.tanh(
        jnp.dot(cls_bf16, wp_bf, preferred_element_type=jnp.float32) + b_pool)
    heads_q = (jnp.dot(pooled_q.astype(jnp.bfloat16), wh_bf,
                       preferred_element_type=jnp.float32) + bh_f)
    con_q = heads_q[:, :LOW_DIM]
    pred_q = heads_q[:, LOW_DIM:LOW_DIM + NUM_CLASSES]

    # (b) Pure-f32 PyTorch-equivalent reference (loose check on bf16 fidelity).
    cls_f32 = cls_bf16.astype(jnp.float32)
    pooled_f = jnp.tanh(cls_f32 @ w_pool.T + b_pool)
    pred_f = pooled_f @ w_cls.T + b_cls
    con_f = pooled_f @ w_red.T + b_red

    assert pred.shape == (B, NUM_CLASSES)
    assert contrast.shape == (B, LOW_DIM)
    assert pooled.shape == (B, H)
    assert jnp.allclose(pooled, pooled_q, atol=2e-3, rtol=2e-2)
    assert jnp.allclose(pred, pred_q, atol=2e-3, rtol=2e-2)
    assert jnp.allclose(contrast, con_q, atol=2e-3, rtol=2e-2)
    assert jnp.allclose(pred, pred_f, atol=5e-2)
    assert jnp.allclose(contrast, con_f, atol=5e-2)

    print("KERNEL_OK")
</pallas_src>

<mosaic_0001>
module attributes {stable_mosaic.version = 11 : i64} {
  func.func @_probe_kernel(%arg0: i32, %arg1: memref<8x128xf32, #tpu.memory_space<vmem>>, %arg2: memref<8x128xf32, #tpu.memory_space<vmem>>) attributes {dimension_semantics = [#tpu.dimension_semantics<arbitrary>], iteration_bounds = array<i64: 2>, scalar_prefetch = 0 : i64, scratch_operands = 0 : i64, tpu.core_type = #tpu.core_type<tc>, window_params = [{pipeline_mode = #tpu.pipeline_mode<synchronous>, transform_indices = @transform_0, window_bounds = array<i64: 8, 128>}, {transform_indices = @transform_1, window_bounds = array<i64: 8, 128>}]} {
    %c0 = arith.constant 0 : index
    %c0_0 = arith.constant 0 : index
    %0 = vector.load %arg1[%c0, %c0_0] : memref<8x128xf32, #tpu.memory_space<vmem>>, vector<8x128xf32>
    %cst = arith.constant 1.000000e+00 : f32
    %1 = vector.broadcast %cst : f32 to vector<8x128xf32>
    %2 = arith.addf %0, %1 : vector<8x128xf32>
    %c0_1 = arith.constant 0 : index
    %c0_2 = arith.constant 0 : index
    %3 = vector.load %arg2[%c0_1, %c0_2] : memref<8x128xf32, #tpu.memory_space<vmem>>, vector<8x128xf32>
    tpu.vector_store %arg2[%c0_1, %c0_2], %2 {strides = array<i32>} : memref<8x128xf32, #tpu.memory_space<vmem>>, vector<8x128xf32>,
    return
  }
  func.func @transform_0(%arg0: i32) -> (i32, i32) {
    %c0_i32 = arith.constant 0 : i32
    %c0_i32_0 = arith.constant 0 : i32
    %c0_i32_1 = arith.constant 0 : i32
    return %c0_i32, %c0_i32_0 : i32, i32
  }
  func.func @transform_1(%arg0: i32) -> (i32, i32) {
    %c0_i32 = arith.constant 0 : i32
    %c0_i32_0 = arith.constant 0 : i32
    return %arg0, %c0_i32 : i32, i32
  }
}

module attributes {stable_mosaic.version = 11 : i64} {
  func.func @_heads_kernel(%arg0: i32, %arg1: memref<8x128xbf16, #tpu.memory_space<vmem>>, %arg2: memref<128x128xbf16, #tpu.memory_space<vmem>>, %arg3: memref<1x128xf32, #tpu.memory_space<vmem>>, %arg4: memref<128x256xbf16, #tpu.memory_space<vmem>>, %arg5: memref<1x256xf32, #tpu.memory_space<vmem>>, %arg6: memref<8x256xf32, #tpu.memory_space<vmem>>) attributes {dimension_semantics = [#tpu.dimension_semantics<parallel>], iteration_bounds = array<i64: 2>, scalar_prefetch = 0 : i64, scratch_operands = 0 : i64, tpu.core_type = #tpu.core_type<tc>, window_params = [{transform_indices = @transform_0, window_bounds = array<i64: 8, 128>}, {pipeline_mode = #tpu.pipeline_mode<synchronous>, transform_indices = @transform_1, window_bounds = array<i64: 128, 128>}, {pipeline_mode = #tpu.pipeline_mode<synchronous>, transform_indices = @transform_2, window_bounds = array<i64: 1, 128>}, {pipeline_mode = #tpu.pipeline_mode<synchronous>, transform_indices = @transform_3, window_bounds = array<i64: 128, 256>}, {pipeline_mode = #tpu.pipeline_mode<synchronous>, transform_indices = @transform_4, window_bounds = array<i64: 1, 256>}, {transform_indices = @transform_5, window_bounds = array<i64: 8, 256>}]} {
    %c0 = arith.constant 0 : index
    %c0_0 = arith.constant 0 : index
    %0 = vector.load %arg1[%c0, %c0_0] : memref<8x128xbf16, #tpu.memory_space<vmem>>, vector<8x128xbf16>
    %c0_1 = arith.constant 0 : index
    %c0_2 = arith.constant 0 : index
    %1 = vector.load %arg2[%c0_1, %c0_2] : memref<128x128xbf16, #tpu.memory_space<vmem>>, vector<128x128xbf16>
    %cst = arith.constant dense<0.000000e+00> : vector<8x128xf32>
    %2 = tpu.matmul %0, %1, %cst {dimension_numbers = #tpu.dot_dimension_numbers<[1], [0], [0], [1], [0, 0, 1, 1], [], []>} : vector<8x128xbf16>, vector<128x128xbf16>, vector<8x128xf32> -> vector<8x128xf32>
    %c0_3 = arith.constant 0 : index
    %c0_4 = arith.constant 0 : index
    %3 = vector.load %arg3[%c0_3, %c0_4] : memref<1x128xf32, #tpu.memory_space<vmem>>, vector<1x128xf32>
    %4 = vector.broadcast %3 : vector<1x128xf32> to vector<8x128xf32>
    %5 = arith.addf %2, %4 : vector<8x128xf32>
    %6 = math.tanh %5 : vector<8x128xf32>
    %7 = arith.truncf %6 : vector<8x128xf32> to vector<8x128xbf16>
    %c0_5 = arith.constant 0 : index
    %c0_6 = arith.constant 0 : index
    %8 = vector.load %arg4[%c0_5, %c0_6] : memref<128x256xbf16, #tpu.memory_space<vmem>>, vector<128x256xbf16>
    %cst_7 = arith.constant dense<0.000000e+00> : vector<8x256xf32>
    %9 = tpu.matmul %7, %8, %cst_7 {dimension_numbers = #tpu.dot_dimension_numbers<[1], [0], [0], [1], [0, 0, 1, 1], [], []>} : vector<8x128xbf16>, vector<128x256xbf16>, vector<8x256xf32> -> vector<8x256xf32>
    %c0_8 = arith.constant 0 : index
    %c0_9 = arith.constant 0 : index
    %10 = vector.load %arg5[%c0_8, %c0_9] : memref<1x256xf32, #tpu.memory_space<vmem>>, vector<1x256xf32>
    %11 = vector.broadcast %10 : vector<1x256xf32> to vector<8x256xf32>
    %12 = arith.addf %9, %11 : vector<8x256xf32>
    %c0_10 = arith.constant 0 : index
    %c0_11 = arith.constant 0 : index
    %13 = vector.load %arg6[%c0_10, %c0_11] : memref<8x256xf32, #tpu.memory_space<vmem>>, vector<8x256xf32>
    tpu.vector_store %arg6[%c0_10, %c0_11], %12 {strides = array<i32>} : memref<8x256xf32, #tpu.memory_space<vmem>>, vector<8x256xf32>,
    return
  }
  func.func @transform_0(%arg0: i32) -> (i32, i32) {
    %c0_i32 = arith.constant 0 : i32
    %c0_i32_0 = arith.constant 0 : i32
    return %arg0, %c0_i32 : i32, i32
  }
  func.func @transform_1(%arg0: i32) -> (i32, i32) {
    %c0_i32 = arith.constant 0 : i32
    %c0_i32_0 = arith.constant 0 : i32
    %c0_i32_1 = arith.constant 0 : i32
    return %c0_i32, %c0_i32_0 : i32, i32
  }
  func.func @transform_2(%arg0: i32) -> (i32, i32) {
    %c0_i32 = arith.constant 0 : i32
    %c0_i32_0 = arith.constant 0 : i32
    %c0_i32_1 = arith.constant 0 : i32
    return %c0_i32, %c0_i32_0 : i32, i32
  }
  func.func @transform_3(%arg0: i32) -> (i32, i32) {
    %c0_i32 = arith.constant 0 : i32
    %c0_i32_0 = arith.constant 0 : i32
    %c0_i32_1 = arith.constant 0 : i32
    return %c0_i32, %c0_i32_0 : i32, i32
  }
  func.func @transform_4(%arg0: i32) -> (i32, i32) {
    %c0_i32 = arith.constant 0 : i32
    %c0_i32_0 = arith.constant 0 : i32
    %c0_i32_1 = arith.constant 0 : i32
    return %c0_i32, %c0_i32_0 : i32, i32
  }
  func.func @transform_5(%arg0: i32) -> (i32, i32) {
    %c0_i32 = arith.constant 0 : i32
    %c0_i32_0 = arith.constant 0 : i32
    return %arg0, %c0_i32 : i32, i32
  }
}

</mosaic_0001>

<llo_original>
// kernel: tpu_custom_call.1
$region0: #{tpu_custom_call.1}
  #allocation0 [shape = 'u32[]', space=smem, size = 0x4, offset = 0x4, fixed_abs, tag = 'smem constant byte address 0x4 - core index']
  #allocation1 [shape = 'u32[144,128]{1,0:T(1,128)}', space=vmem, size = 0x12000, scoped, tag = 'internal scratch']
  %s0 = inlined_call_operand.hbm [shape: f32[8,128], index: 0, kind: input, shape index: {}]
  %s1 = inlined_call_operand.hbm [shape: f32[16,128], index: 1, kind: output, shape index: {}]
  %s2 = sld [smem:[#allocation0]]
  $region41: #{tpu_custom_call.1} parent=0
    _
  %s4 = ssub.s32 1, %s2
  %s5 = scalar_select 0, %s4, %s2
  $region1: #{tpu_custom_call.1} parent=0
    #allocation2 [shape = 'u8[4096]{0}', space=vmem, size = 0x1000, scoped, tag = 'input window, operand 0, single buffered']
    #allocation3 [shape = 's32[2]{0}', space=sflag, size = 0x8, scoped, tag = 'scoped memory for tpu_custom_call.1']
    #allocation4 [shape = 's32[2]{0}', space=sflag, size = 0x8, scoped, tag = 'scoped memory for tpu_custom_call.1']
    #allocation5 [shape = 'u8[8192]{0}', space=vmem, size = 0x2000, scoped, tag = 'output window, operand 0']
    %6 = vsyncpa [#allocation3], 0
    %7 = vsyncpa [#allocation4], 0
    %s8 = scalar_lea.sflag [#allocation4], 1
    %9 = vsyncpa %s8, 0
    loop: start=0, step=1, limit=4
    $region2: #{tpu_custom_call.1} parent=1 // loop_pre_header
      _
    $region3: #{tpu_custom_call.1} parent=1 // loop_header
      %s11 = sphi 0, %s15
      %p12 = scmp.ge.s32.totalorder %s11, 4
      %s19 = sphi 0, %s19
      %s21 = sphi 0, %s19
      %s22 = sphi 0, %s21
      %s36 = sphi 0, %s22
      %s42 = sphi 0, %s44
      %s45 = sphi 0, %s42
      %s46 = sphi 0, %s45
      %s62 = sphi 0, %s46
    $region4: #{tpu_custom_call.1} parent=1 // loop_header_branch
      %14 = sbr.rel (%p12) target = $region8
    $region5: #{tpu_custom_call.1} parent=1 // loop_body
      %s16 = ssub.s32 %s11, 1
      %s17 = ssub.s32 %s11, 2
      %s18 = sadd.s32 %s11, 1
      %s20 = sadd.s32 %s19, 1
      %p23 = scmp.eq.s32.totalorder %s11, 1
      %p24 = scmp.ne.s32.totalorder %s19, %s21
      %p25 = scmp.eq.s32.totalorder %s11, 0
      %p26 = por %p24, %p25
      %p27 = scmp.ne.s32.totalorder %s19, %s21
      %p28 = scmp.eq.s32.totalorder %s16, 1
      %p29 = por %p27, %p28
      %p30 = scmp.ne.s32.totalorder %s21, %s22
      %p31 = scmp.eq.s32.totalorder %s16, 0
      %p32 = por %p30, %p31
      %p33 = scmp.ne.s32.totalorder %s21, %s22
      %p34 = scmp.eq.s32.totalorder %s17, 1
      %p35 = por %p33, %p34
      %p37 = scmp.ne.s32.totalorder %s22, %s36
      %p38 = scmp.eq.s32.totalorder %s17, 0
      %p39 = por %p37, %p38
      %s40 = ssub.s32 %s11, %s18
      %p41 = scmp.eq.s32.totalorder %s40, 0
      %s43 = sadd.s32 %s42, 1
      %s44 = scalar_select %p41, %s42, %s43
      %p47 = pneg %p41
      %p48 = scmp.eq.s32.totalorder %s11, 1
      %p49 = por %p47, %p48
      %p50 = scmp.ne.s32.totalorder %s42, %s45
      %p51 = scmp.eq.s32.totalorder %s11, 0
      %p52 = por %p50, %p51
      %p53 = scmp.ne.s32.totalorder %s42, %s45
      %p54 = scmp.eq.s32.totalorder %s16, 1
      %p55 = por %p53, %p54
      %p56 = scmp.ne.s32.totalorder %s45, %s46
      %p57 = scmp.eq.s32.totalorder %s16, 0
      %p58 = por %p56, %p57
      %p59 = scmp.ne.s32.totalorder %s45, %s46
      %p60 = scmp.eq.s32.totalorder %s17, 1
      %p61 = por %p59, %p60
      %p63 = scmp.ne.s32.totalorder %s46, %s62
      %p64 = scmp.eq.s32.totalorder %s17, 0
      %p65 = por %p63, %p64
      %p66 = scmp.le.s32.totalorder 1, %s11
      %p67 = scmp.lt.s32.totalorder %s11, 3
      %p68 = pnand %p66, %p67
      %p69 = pneg %p68
      // Predicated region
      $region9: #{tpu_custom_call.1} parent=5 // pred_check
        _
      $region10: #{tpu_custom_call.1} parent=5 // pred_check_branch
        %71 = sbr.rel (%p68) target = $region12
      $region11: #{tpu_custom_call.1} parent=5 // pred_region
        %s72 = ssub.s32 %s11, 1
        // Predicated region
        $region13: #{tpu_custom_call.1} parent=11 // pred_check
          %p73 = pneg %p32
        $region14: #{tpu_custom_call.1} parent=11 // pred_check_branch
          %75 = sbr.rel (%p73) target = $region16
        $region15: #{tpu_custom_call.1} parent=11 // pred_region
          %s77 = ssub.s32 128, 128
          %78 = vsyncadd [#allocation3], %s77
          %s80 = sshll.u32 [#allocation2], 4
          %s81 = int_to_ptr.vmem [resolvable:$true] %s80
          %83 = dma.hbm_to_vmem [thread:$0]  %s0, 128, %s81, [#allocation3]
        $region16: #{tpu_custom_call.1} parent=11 // pred_fallthru
          _
      $region12: #{tpu_custom_call.1} parent=5 // pred_fallthru
        _
      %p84 = scmp.lt.s32.totalorder %s11, 2
      // Predicated region
      $region17: #{tpu_custom_call.1} parent=5 // pred_check
        %p85 = pneg %p84
      $region18: #{tpu_custom_call.1} parent=5 // pred_check_branch
        %87 = sbr.rel (%p85) target = $region20
      $region19: #{tpu_custom_call.1} parent=5 // pred_region
        _
      $region20: #{tpu_custom_call.1} parent=5 // pred_fallthru
        _
      %p88 = scmp.le.s32.totalorder 1, %s11
      %p89 = scmp.lt.s32.totalorder %s11, 3
      %p90 = pnand %p88, %p89
      %p91 = pneg %p90
      // Predicated region
      $region21: #{tpu_custom_call.1} parent=5 // pred_check
        _
      $region22: #{tpu_custom_call.1} parent=5 // pred_check_branch
        %93 = sbr.rel (%p90) target = $region24
      $region23: #{tpu_custom_call.1} parent=5 // pred_region
        %s94 = ssub.s32 %s11, 1
        // Predicated region
        $region25: #{tpu_custom_call.1} parent=23 // pred_check
          %p95 = pneg %p32
        $region26: #{tpu_custom_call.1} parent=23 // pred_check_branch
          %97 = sbr.rel (%p95) target = $region28
        $region27: #{tpu_custom_call.1} parent=23 // pred_region
          %98 = dma.done [#allocation3], 128
        $region28: #{tpu_custom_call.1} parent=23 // pred_fallthru
          _
        %p99 = pneg %p32
        %p100 = pneg %p29
        %p101 = pneg %p58
        %p102 = pneg %p55
        %s103 = sand.u32 %s45, 1
        %s104 = scalar_lea.sflag [#allocation4], %s103
        %s105 = sand.u32 %s45, 1
        %s106 = smul.addr %s105, 8
        %s107 = scalar_lea.vmem [#allocation5], %s106
        %v108 = vld [vmem:[#allocation2] sm:$0xff]
        %v109 = vadd.f32 %v108, 1.0
        %110 = vst [vmem:[%s107] sm:$0xff] %v109
        %s111 = sand.u32 %s45, 1
        %s112 = scalar_lea.sflag [#allocation4], %s111
        %s113 = sand.u32 %s45, 1
        %s114 = smul.addr %s113, 8
        %s115 = scalar_lea.vmem [#allocation5], %s114
        // Predicated region
        $region29: #{tpu_custom_call.1} parent=23 // pred_check
          %p116 = pneg %p55
        $region30: #{tpu_custom_call.1} parent=23 // pred_check_branch
          %118 = sbr.rel (%p116) target = $region32
        $region31: #{tpu_custom_call.1} parent=23 // pred_region
          %s120 = ssub.s32 128, 128
          %121 = vsyncadd %s112, %s120
          %s122 = smul.addr %s16, 128
          %s123 = scalar_lea.hbm %s1, %s122
          %s125 = sshll.u32 %s115, 4
          %s126 = int_to_ptr.vmem [resolvable:$true] %s125
          %128 = dma.vmem_to_hbm [thread:$0]  %s126, 128, %s123, %s112
        $region32: #{tpu_custom_call.1} parent=23 // pred_fallthru
          _
      $region24: #{tpu_custom_call.1} parent=5 // pred_fallthru
        _
      %p129 = scmp.le.s32.totalorder 2, %s11
      // Predicated region
      $region33: #{tpu_custom_call.1} parent=5 // pred_check
        %p130 = pneg %p129
      $region34: #{tpu_custom_call.1} parent=5 // pred_check_branch
        %132 = sbr.rel (%p130) target = $region36
      $region35: #{tpu_custom_call.1} parent=5 // pred_region
        %s133 = ssub.s32 %s11, 2
        // Predicated region
        $region37: #{tpu_custom_call.1} parent=35 // pred_check
          %p134 = pneg %p61
        $region38: #{tpu_custom_call.1} parent=35 // pred_check_branch
          %136 = sbr.rel (%p134) target = $region40
        $region39: #{tpu_custom_call.1} parent=35 // pred_region
          %s137 = sand.u32 %s46, 1
          %s138 = scalar_lea.sflag [#allocation4], %s137
          %s139 = sand.u32 %s46, 1
          %s140 = smul.addr %s139, 8
          %s141 = scalar_lea.vmem [#allocation5], %s140
          %142 = dma.done %s138, 128
        $region40: #{tpu_custom_call.1} parent=35 // pred_fallthru
          _
      $region36: #{tpu_custom_call.1} parent=5 // pred_fallthru
        _
    $region6: #{tpu_custom_call.1} parent=1 // loop_footer
      %s15 = sadd.s32 1, %s11
    $region7: #{tpu_custom_call.1} parent=1 // loop_footer_branch
      %10 = sbr.rel target = $region3
    $region8: #{tpu_custom_call.1} parent=1 // loop_exit
      _
    %143 = vsyncpa [#allocation3], 1
    %s144 = scalar_lea.sflag [#allocation3], 1
    %145 = vsyncpa %s144, 1
    %146 = vsyncpa [#allocation4], 1
    %s147 = scalar_lea.sflag [#allocation4], 1
    %148 = vsyncpa %s147, 1

// kernel: model_forward.1
$region0: #{model_forward.1}
  #allocation0 [shape = 'u32[]', space=smem, size = 0x4, offset = 0x4, fixed_abs, tag = 'smem constant byte address 0x4 - core index']
  #allocation1 [shape = 'u32[144,128]{1,0:T(1,128)}', space=vmem, size = 0x12000, scoped, tag = 'internal scratch']
  %s0 = inlined_call_operand.vmem [shape: bf16[16,128], index: 0, kind: input, shape index: {}]
  %s1 = inlined_call_operand.hbm [shape: bf16[128,128], index: 1, kind: input, shape index: {}]
  %s2 = inlined_call_operand.vmem [shape: f32[1,128], index: 2, kind: input, shape index: {}]
  %s3 = inlined_call_operand.hbm [shape: bf16[128,256], index: 3, kind: input, shape index: {}]
  %s4 = inlined_call_operand.vmem [shape: f32[1,256], index: 4, kind: input, shape index: {}]
  %s5 = inlined_call_operand.vmem [shape: f32[16,256], index: 5, kind: output, shape index: {}]
  %s6 = sld [smem:[#allocation0]]
  $region61: #{model_forward.1} parent=0
    _
  %s8 = ssub.s32 1, %s6
  %s9 = scalar_select 0, %s8, %s6
  $region1: #{model_forward.1} parent=0
    #allocation2 [shape = 'u8[32768]{0}', space=vmem, size = 0x8000, scoped, tag = 'input window, operand 1, single buffered']
    #allocation3 [shape = 's32[2]{0}', space=sflag, size = 0x8, scoped, tag = 'scoped memory for model_forward.1']
    #allocation4 [shape = 'u8[65536]{0}', space=vmem, size = 0x10000, scoped, tag = 'input window, operand 3, single buffered']
    #allocation5 [shape = 's32[1]{0}', space=sflag, size = 0x4, scoped, tag = 'scoped memory for model_forward.1']
    %10 = vsyncpa [#allocation3], 0
    %11 = vsyncpa [#allocation5], 0
    loop: start=0, step=1, limit=4
    $region2: #{model_forward.1} parent=1 // loop_pre_header
      _
    $region3: #{model_forward.1} parent=1 // loop_header
      %s13 = sphi 0, %s17
      %p14 = scmp.ge.s32.totalorder %s13, 4
      %s23 = sphi 0, %s25
      %s26 = sphi 0, %s23
      %s27 = sphi 0, %s26
      %s43 = sphi 0, %s27
      %s47 = sphi 0, %s47
      %s49 = sphi 0, %s47
      %s50 = sphi 0, %s49
      %s64 = sphi 0, %s50
      %s68 = sphi 0, %s68
      %s70 = sphi 0, %s68
      %s71 = sphi 0, %s70
      %s85 = sphi 0, %s71
      %s89 = sphi 0, %s89
      %s91 = sphi 0, %s89
      %s92 = sphi 0, %s91
      %s106 = sphi 0, %s92
      %s110 = sphi 0, %s110
      %s112 = sphi 0, %s110
      %s113 = sphi 0, %s112
      %s127 = sphi 0, %s113
      %s133 = sphi 0, %s135
      %s136 = sphi 0, %s133
      %s137 = sphi 0, %s136
      %s153 = sphi 0, %s137
    $region4: #{model_forward.1} parent=1 // loop_header_branch
      %16 = sbr.rel (%p14) target = $region8
    $region5: #{model_forward.1} parent=1 // loop_body
      %s18 = ssub.s32 %s13, 1
      %s19 = ssub.s32 %s13, 2
      %s20 = sadd.s32 %s13, 1
      %s21 = ssub.s32 %s13, %s20
      %p22 = scmp.eq.s32.totalorder %s21, 0
      %s24 = sadd.s32 %s23, 1
      %s25 = scalar_select %p22, %s23, %s24
      %p28 = pneg %p22
      %p29 = scmp.eq.s32.totalorder %s13, 1
      %p30 = por %p28, %p29
      %p31 = scmp.ne.s32.totalorder %s23, %s26
      %p32 = scmp.eq.s32.totalorder %s13, 0
      %p33 = por %p31, %p32
      %p34 = scmp.ne.s32.totalorder %s23, %s26
      %p35 = scmp.eq.s32.totalorder %s18, 1
      %p36 = por %p34, %p35
      %p37 = scmp.ne.s32.totalorder %s26, %s27
      %p38 = scmp.eq.s32.totalorder %s18, 0
      %p39 = por %p37, %p38
      %p40 = scmp.ne.s32.totalorder %s26, %s27
      %p41 = scmp.eq.s32.totalorder %s19, 1
      %p42 = por %p40, %p41
      %p44 = scmp.ne.s32.totalorder %s27, %s43
      %p45 = scmp.eq.s32.totalorder %s19, 0
      %p46 = por %p44, %p45
      %s48 = sadd.s32 %s47, 1
      %p51 = scmp.eq.s32.totalorder %s13, 1
      %p52 = scmp.ne.s32.totalorder %s47, %s49
      %p53 = scmp.eq.s32.totalorder %s13, 0
      %p54 = por %p52, %p53
      %p55 = scmp.ne.s32.totalorder %s47, %s49
      %p56 = scmp.eq.s32.totalorder %s18, 1
      %p57 = por %p55, %p56
      %p58 = scmp.ne.s32.totalorder %s49, %s50
      %p59 = scmp.eq.s32.totalorder %s18, 0
      %p60 = por %p58, %p59
      %p61 = scmp.ne.s32.totalorder %s49, %s50
      %p62 = scmp.eq.s32.totalorder %s19, 1
      %p63 = por %p61, %p62
      %p65 = scmp.ne.s32.totalorder %s50, %s64
      %p66 = scmp.eq.s32.totalorder %s19, 0
      %p67 = por %p65, %p66
      %s69 = sadd.s32 %s68, 1
      %p72 = scmp.eq.s32.totalorder %s13, 1
      %p73 = scmp.ne.s32.totalorder %s68, %s70
      %p74 = scmp.eq.s32.totalorder %s13, 0
      %p75 = por %p73, %p74
      %p76 = scmp.ne.s32.totalorder %s68, %s70
      %p77 = scmp.eq.s32.totalorder %s18, 1
      %p78 = por %p76, %p77
      %p79 = scmp.ne.s32.totalorder %s70, %s71
      %p80 = scmp.eq.s32.totalorder %s18, 0
      %p81 = por %p79, %p80
      %p82 = scmp.ne.s32.totalorder %s70, %s71
      %p83 = scmp.eq.s32.totalorder %s19, 1
      %p84 = por %p82, %p83
      %p86 = scmp.ne.s32.totalorder %s71, %s85
      %p87 = scmp.eq.s32.totalorder %s19, 0
      %p88 = por %p86, %p87
      %s90 = sadd.s32 %s89, 1
      %p93 = scmp.eq.s32.totalorder %s13, 1
      %p94 = scmp.ne.s32.totalorder %s89, %s91
      %p95 = scmp.eq.s32.totalorder %s13, 0
      %p96 = por %p94, %p95
      %p97 = scmp.ne.s32.totalorder %s89, %s91
      %p98 = scmp.eq.s32.totalorder %s18, 1
      %p99 = por %p97, %p98
      %p100 = scmp.ne.s32.totalorder %s91, %s92
      %p101 = scmp.eq.s32.totalorder %s18, 0
      %p102 = por %p100, %p101
      %p103 = scmp.ne.s32.totalorder %s91, %s92
      %p104 = scmp.eq.s32.totalorder %s19, 1
      %p105 = por %p103, %p104
      %p107 = scmp.ne.s32.totalorder %s92, %s106
      %p108 = scmp.eq.s32.totalorder %s19, 0
      %p109 = por %p107, %p108
      %s111 = sadd.s32 %s110, 1
      %p114 = scmp.eq.s32.totalorder %s13, 1
      %p115 = scmp.ne.s32.totalorder %s110, %s112
      %p116 = scmp.eq.s32.totalorder %s13, 0
      %p117 = por %p115, %p116
      %p118 = scmp.ne.s32.totalorder %s110, %s112
      %p119 = scmp.eq.s32.totalorder %s18, 1
      %p120 = por %p118, %p119
      %p121 = scmp.ne.s32.totalorder %s112, %s113
      %p122 = scmp.eq.s32.totalorder %s18, 0
      %p123 = por %p121, %p122
      %p124 = scmp.ne.s32.totalorder %s112, %s113
      %p125 = scmp.eq.s32.totalorder %s19, 1
      %p126 = por %p124, %p125
      %p128 = scmp.ne.s32.totalorder %s113, %s127
      %p129 = scmp.eq.s32.totalorder %s19, 0
      %p130 = por %p128, %p129
      %s131 = ssub.s32 %s13, %s20
      %p132 = scmp.eq.s32.totalorder %s131, 0
      %s134 = sadd.s32 %s133, 1
      %s135 = scalar_select %p132, %s133, %s134
      %p138 = pneg %p132
      %p139 = scmp.eq.s32.totalorder %s13, 1
      %p140 = por %p138, %p139
      %p141 = scmp.ne.s32.totalorder %s133, %s136
      %p142 = scmp.eq.s32.totalorder %s13, 0
      %p143 = por %p141, %p142
      %p144 = scmp.ne.s32.totalorder %s133, %s136
      %p145 = scmp.eq.s32.totalorder %s18, 1
      %p146 = por %p144, %p145
      %p147 = scmp.ne.s32.totalorder %s136, %s137
      %p148 = scmp.eq.s32.totalorder %s18, 0
      %p149 = por %p147, %p148
      %p150 = scmp.ne.s32.totalorder %s136, %s137
      %p151 = scmp.eq.s32.totalorder %s19, 1
      %p152 = por %p150, %p151
      %p154 = scmp.ne.s32.totalorder %s137, %s153
      %p155 = scmp.eq.s32.totalorder %s19, 0
      %p156 = por %p154, %p155
      %p157 = scmp.le.s32.totalorder 1, %s13
      %p158 = scmp.lt.s32.totalorder %s13, 3
      %p159 = pnand %p157, %p158
      %p160 = pneg %p159
      // Predicated region
      $region9: #{model_forward.1} parent=5 // pred_check
        _
      $region10: #{model_forward.1} parent=5 // pred_check_branch
        %162 = sbr.rel (%p159) target = $region12
      $region11: #{model_forward.1} parent=5 // pred_region
        %s163 = ssub.s32 %s13, 1
        // Predicated region
        $region13: #{model_forward.1} parent=11 // pred_check
          %p164 = pneg %p60
        $region14: #{model_forward.1} parent=11 // pred_check_branch
          %166 = sbr.rel (%p164) target = $region16
        $region15: #{model_forward.1} parent=11 // pred_region
          %s168 = ssub.s32 1024, 1024
          %169 = vsyncadd [#allocation3], %s168
          %s170 = sshll.u32 [#allocation2], 4
          %s171 = int_to_ptr.vmem [resolvable:$true] %s170
          %176 = dma.hbm_to_vmem [thread:$0]  %s1, 1024, %s171, [#allocation3], 64, 64, 4
        $region16: #{model_forward.1} parent=11 // pred_fallthru
          _
        // Predicated region
        $region17: #{model_forward.1} parent=11 // pred_check
          %p177 = pneg %p81
        $region18: #{model_forward.1} parent=11 // pred_check_branch
          %179 = sbr.rel (%p177) target = $region20
        $region19: #{model_forward.1} parent=11 // pred_region
          _
        $region20: #{model_forward.1} parent=11 // pred_fallthru
          _
        // Predicated region
        $region21: #{model_forward.1} parent=11 // pred_check
          %p180 = pneg %p102
        $region22: #{model_forward.1} parent=11 // pred_check_branch
          %182 = sbr.rel (%p180) target = $region24
        $region23: #{model_forward.1} parent=11 // pred_region
          %s184 = ssub.s32 2048, 2048
          %185 = vsyncadd [#allocation5], %s184
          %s186 = sshll.u32 [#allocation4], 4
          %s187 = int_to_ptr.vmem [resolvable:$true] %s186
          %192 = dma.hbm_to_vmem [thread:$0]  %s3, 2048, %s187, [#allocation5], 128, 128, 8
        $region24: #{model_forward.1} parent=11 // pred_fallthru
          _
        // Predicated region
        $region25: #{model_forward.1} parent=11 // pred_check
          %p193 = pneg %p123
        $region26: #{model_forward.1} parent=11 // pred_check_branch
          %195 = sbr.rel (%p193) target = $region28
        $region27: #{model_forward.1} parent=11 // pred_region
          _
        $region28: #{model_forward.1} parent=11 // pred_fallthru
          _
      $region12: #{model_forward.1} parent=5 // pred_fallthru
        _
      %p196 = scmp.lt.s32.totalorder %s13, 2
      // Predicated region
      $region29: #{model_forward.1} parent=5 // pred_check
        %p197 = pneg %p196
      $region30: #{model_forward.1} parent=5 // pred_check_branch
        %199 = sbr.rel (%p197) target = $region32
      $region31: #{model_forward.1} parent=5 // pred_region
        // Predicated region
        $region33: #{model_forward.1} parent=31 // pred_check
          %p200 = pneg %p33
        $region34: #{model_forward.1} parent=31 // pred_check_branch
          %202 = sbr.rel (%p200) target = $region36
        $region35: #{model_forward.1} parent=31 // pred_region
          %p203 = scmp.lt.s32.totalorder %s13, 1
          %s204 = scalar_select %p203, %s13, 1
          %s205 = smul.addr %s204, 4
          %s206 = scalar_lea.vmem %s0, %s205
        $region36: #{model_forward.1} parent=31 // pred_fallthru
          _
      $region32: #{model_forward.1} parent=5 // pred_fallthru
        _
      %p207 = scmp.le.s32.totalorder 1, %s13
      %p208 = scmp.lt.s32.totalorder %s13, 3
      %p209 = pnand %p207, %p208
      %p210 = pneg %p209
      // Predicated region
      $region37: #{model_forward.1} parent=5 // pred_check
        _
      $region38: #{model_forward.1} parent=5 // pred_check_branch
        %212 = sbr.rel (%p209) target = $region40
      $region39: #{model_forward.1} parent=5 // pred_region
        %s213 = ssub.s32 %s13, 1
        // Predicated region
        $region41: #{model_forward.1} parent=39 // pred_check
          %p214 = pneg %p60
        $region42: #{model_forward.1} parent=39 // pred_check_branch
          %216 = sbr.rel (%p214) target = $region44
        $region43: #{model_forward.1} parent=39 // pred_region
          %217 = dma.done [#allocation3], 1024
        $region44: #{model_forward.1} parent=39 // pred_fallthru
          _
        // Predicated region
        $region45: #{model_forward.1} parent=39 // pred_check
          %p218 = pneg %p102
        $region46: #{model_forward.1} parent=39 // pred_check_branch
          %220 = sbr.rel (%p218) target = $region48
        $region47: #{model_forward.1} parent=39 // pred_region
          %221 = dma.done [#allocation5], 2048
        $region48: #{model_forward.1} parent=39 // pred_fallthru
          _
        %p222 = scmp.lt.s32.totalorder %s18, 1
        %s223 = scalar_select %p222, %s18, 1
        %s224 = smul.addr %s223, 4
        %s225 = scalar_lea.vmem %s0, %s224
        %p226 = pneg %p39
        %p227 = pneg %p36
        %p228 = pneg %p60
        %p229 = pneg %p57
        %p230 = pneg %p81
        %p231 = pneg %p78
        %p232 = pneg %p102
        %p233 = pneg %p99
        %p234 = pneg %p123
        %p235 = pneg %p120
        %p236 = pneg %p149
        %p237 = pneg %p146
        %p238 = scmp.lt.s32.totalorder %s18, 1
        %s239 = scalar_select %p238, %s18, 1
        %s240 = smul.addr %s239, 2
        %s241 = smul.addr %s240, 8
        %s242 = scalar_lea.vmem %s5, %s241
        %p243 = scmp.lt.s32.totalorder %s18, 1
        %s244 = scalar_select %p243, %s18, 1
        %s245 = smul.addr %s244, 4
        %s246 = scalar_lea.vmem %s0, %s245
        %p247 = scmp.lt.s32.totalorder %s18, 1
        %s248 = scalar_select %p247, %s18, 1
        %s249 = smul.addr %s248, 2
        %s250 = smul.addr %s249, 8
        %s251 = scalar_lea.vmem %s5, %s250
        %v253 = vld [vmem:[%s246] sm:$0xf]
        %v254 = vld [vmem:[#allocation2] sm:$0xf]
        %v255 = vld [vmem:[#allocation2 + $0x4] sm:$0xf]
        %v256 = vld [vmem:[#allocation2 + $0x8] sm:$0xf]
        %v257 = vld [vmem:[#allocation2 + $0xc] sm:$0xf]
        %v258 = vld [vmem:[#allocation2 + $0x10] sm:$0xf]
        %v259 = vld [vmem:[#allocation2 + $0x14] sm:$0xf]
        %v260 = vld [vmem:[#allocation2 + $0x18] sm:$0xf]
        %v261 = vld [vmem:[#allocation2 + $0x1c] sm:$0xf]
        %v262 = vld [vmem:[#allocation2 + $0x20] sm:$0xf]
        %v263 = vld [vmem:[#allocation2 + $0x24] sm:$0xf]
        %v264 = vld [vmem:[#allocation2 + $0x28] sm:$0xf]
        %v265 = vld [vmem:[#allocation2 + $0x2c] sm:$0xf]
        %v266 = vld [vmem:[#allocation2 + $0x30] sm:$0xf]
        %v267 = vld [vmem:[#allocation2 + $0x34] sm:$0xf]
        %v268 = vld [vmem:[#allocation2 + $0x38] sm:$0xf]
        %v269 = vld [vmem:[#allocation2 + $0x3c] sm:$0xf]
        %v270 = vld [vmem:[%s2] sm:$0x1]
        %v272 = vlaneseq
        %v273 = vshrl.u32 %v272, 7
        %v274 = vsub.s32 0, %v273
        %v275 = vrot.slane %v270, %v274
        %v293 = vunpack.c.l.b16 %v254
        %v294 = vunpack.c.l.b16 %v255
        %v295 = vunpack.c.l.b16 %v256
        %v296 = vunpack.c.l.b16 %v257
        %v297 = vunpack.c.l.b16 %v258
        %v298 = vunpack.c.l.b16 %v259
        %v299 = vunpack.c.l.b16 %v260
        %v300 = vunpack.c.l.b16 %v261
        %v301 = vunpack.c.l.b16 %v262
        %v302 = vunpack.c.l.b16 %v263
        %v303 = vunpack.c.l.b16 %v264
        %v304 = vunpack.c.l.b16 %v265
        %v305 = vunpack.c.l.b16 %v266
        %v306 = vunpack.c.l.b16 %v267
        %v307 = vunpack.c.l.b16 %v268
        %v308 = vunpack.c.l.b16 %v269
        %v309 = vpack.c.b16 %v294, %v293
        %v310 = vpack.c.b16 %v296, %v295
        %v311 = vpack.c.b16 %v298, %v297
        %v312 = vpack.c.b16 %v300, %v299
        %v313 = vpack.c.b16 %v302, %v301
        %v314 = vpack.c.b16 %v304, %v303
        %v315 = vpack.c.b16 %v306, %v305
        %v316 = vpack.c.b16 %v308, %v307
        %325 = vmatprep.subr.bf16.mxu0 0
        %326 = vmatpush1.bf16.msra.mxu0 %v316
        %327 = vmatprep.subr.bf16.mxu0 0
        %328 = vmatpush1.bf16.msra.mxu0 %v315
        %329 = vmatprep.subr.bf16.mxu0 0
        %330 = vmatpush1.bf16.msra.mxu0 %v314
        %331 = vmatprep.subr.bf16.mxu0 0
        %332 = vmatpush1.bf16.msra.mxu0 %v313
        %333 = vmatprep.subr.bf16.mxu0 0
        %334 = vmatpush1.bf16.msra.mxu0 %v312
        %335 = vmatprep.subr.bf16.mxu0 0
        %336 = vmatpush1.bf16.msra.mxu0 %v311
        %337 = vmatprep.subr.bf16.mxu0 0
        %338 = vmatpush1.bf16.msra.mxu0 %v310
        %339 = vmatprep.subr.bf16.mxu0 0
        %340 = vmatpush1.bf16.msra.mxu0 %v309
        %341 = vmatprep.subr.bf16.mxu0 0
        %342 = vmatpush2.bf16.msra.mxu0 0
        %343 = vmatprep.subr.bf16.mxu0 0
        %344 = vmatpush2.bf16.msra.mxu0 0
        %345 = vmatprep.subr.bf16.mxu0 0
        %346 = vmatpush2.bf16.msra.mxu0 0
        %347 = vmatprep.subr.bf16.mxu0 0
        %348 = vmatpush2.bf16.msra.mxu0 0
        %349 = vmatprep.subr.bf16.mxu0 0
        %350 = vmatpush2.bf16.msra.mxu0 0
        %351 = vmatprep.subr.bf16.mxu0 0
        %352 = vmatpush2.bf16.msra.mxu0 0
        %353 = vmatprep.subr.bf16.mxu0 0
        %354 = vmatpush2.bf16.msra.mxu0 0
        %355 = vmatprep.subr.bf16.mxu0 0
        %356 = vmatpush2.bf16.msra.mxu0 0
        %357 = vmatprep.mubr.bf16.mxu0 0
        %358 = vmatmul.mubr.bf16.gmra.mxu0 %v253
        %v359 = vpop.f32.mrf.mxu0
        %v360 = vadd.f32 %v275, %v359
        %v361 = vpop.f32.mrf.mxu0
        %v362 = vpop.f32.mrf.mxu0
        %v363 = vpop.f32.mrf.mxu0
        %364 = vdwg.mxu0
        %v365 = vtanh.pop %v360
        %v366 = vpack.c.bf16 %v365, %v365
        %v367 = vld [vmem:[#allocation4] sm:$0xff]
        %v368 = vld [vmem:[#allocation4 + $0x8] sm:$0xff]
        %v369 = vld [vmem:[#allocation4 + $0x10] sm:$0xff]
        %v370 = vld [vmem:[#allocation4 + $0x18] sm:$0xff]
        %v371 = vld [vmem:[#allocation4 + $0x20] sm:$0xff]
        %v372 = vld [vmem:[#allocation4 + $0x28] sm:$0xff]
        %v373 = vld [vmem:[#allocation4 + $0x30] sm:$0xff]
        %v374 = vld [vmem:[#allocation4 + $0x38] sm:$0xff]
        %v375 = vld [vmem:[#allocation4 + $0x40] sm:$0xff]
        %v376 = vld [vmem:[#allocation4 + $0x48] sm:$0xff]
        %v377 = vld [vmem:[#allocation4 + $0x50] sm:$0xff]
        %v378 = vld [vmem:[#allocation4 + $0x58] sm:$0xff]
        %v379 = vld [vmem:[#allocation4 + $0x60] sm:$0xff]
        %v380 = vld [vmem:[#allocation4 + $0x68] sm:$0xff]
        %v381 = vld [vmem:[#allocation4 + $0x70] sm:$0xff]
        %v382 = vld [vmem:[#allocation4 + $0x78] sm:$0xff]
        %v383 = vld [vmem:[%s4] sm:$0x3]
        %v385 = vlaneseq
        %v386 = vshrl.u32 %v385, 7
        %v387 = vsub.s32 0, %v386
        %v388 = vrot.slane %v383, %v387
        %v389 = vlaneseq
        %v390 = vshrl.u32 %v389, 7
        %v391 = vsub.s32 1, %v390
        %v392 = vrot.slane %v383, %v391
        %v411 = vunpack.c.l.b16 %v367
        %v412 = vunpack.c.h.b16 %v367
        %v413 = vunpack.c.l.b16 %v368
        %v414 = vunpack.c.h.b16 %v368
        %v415 = vunpack.c.l.b16 %v369
        %v416 = vunpack.c.h.b16 %v369
        %v417 = vunpack.c.l.b16 %v370
        %v418 = vunpack.c.h.b16 %v370
        %v419 = vunpack.c.l.b16 %v371
        %v420 = vunpack.c.h.b16 %v371
        %v421 = vunpack.c.l.b16 %v372
        %v422 = vunpack.c.h.b16 %v372
        %v423 = vunpack.c.l.b16 %v373
        %v424 = vunpack.c.h.b16 %v373
        %v425 = vunpack.c.l.b16 %v374
        %v426 = vunpack.c.h.b16 %v374
        %v427 = vunpack.c.l.b16 %v375
        %v428 = vunpack.c.h.b16 %v375
        %v429 = vunpack.c.l.b16 %v376
        %v430 = vunpack.c.h.b16 %v376
        %v431 = vunpack.c.l.b16 %v377
        %v432 = vunpack.c.h.b16 %v377
        %v433 = vunpack.c.l.b16 %v378
        %v434 = vunpack.c.h.b16 %v378
        %v435 = vunpack.c.l.b16 %v379
        %v436 = vunpack.c.h.b16 %v379
        %v437 = vunpack.c.l.b16 %v380
        %v438 = vunpack.c.h.b16 %v380
        %v439 = vunpack.c.l.b16 %v381
        %v440 = vunpack.c.h.b16 %v381
        %v441 = vunpack.c.l.b16 %v382
        %v442 = vunpack.c.h.b16 %v382
        %v443 = vpack.c.b16 %v413, %v411
        %v444 = vpack.c.b16 %v414, %v412
        %v445 = vpack.c.b16 %v417, %v415
        %v446 = vpack.c.b16 %v418, %v416
        %v447 = vpack.c.b16 %v421, %v419
        %v448 = vpack.c.b16 %v422, %v420
        %v449 = vpack.c.b16 %v425, %v423
        %v450 = vpack.c.b16 %v426, %v424
        %v451 = vpack.c.b16 %v429, %v427
        %v452 = vpack.c.b16 %v430, %v428
        %v453 = vpack.c.b16 %v433, %v431
        %v454 = vpack.c.b16 %v434, %v432
        %v455 = vpack.c.b16 %v437, %v435
        %v456 = vpack.c.b16 %v438, %v436
        %v457 = vpack.c.b16 %v441, %v439
        %v458 = vpack.c.b16 %v442, %v440
        %475 = vmatprep.subr.bf16.mxu0 %v458
        %476 = vmatpush1.bf16.msra.mxu0 %v457
        %477 = vmatprep.subr.bf16.mxu0 %v456
        %478 = vmatpush1.bf16.msra.mxu0 %v455
        %479 = vmatprep.subr.bf16.mxu0 %v454
        %480 = vmatpush1.bf16.msra.mxu0 %v453
        %481 = vmatprep.subr.bf16.mxu0 %v452
        %482 = vmatpush1.bf16.msra.mxu0 %v451
        %483 = vmatprep.subr.bf16.mxu0 %v450
        %484 = vmatpush1.bf16.msra.mxu0 %v449
        %485 = vmatprep.subr.bf16.mxu0 %v448
        %486 = vmatpush1.bf16.msra.mxu0 %v447
        %487 = vmatprep.subr.bf16.mxu0 %v446
        %488 = vmatpush1.bf16.msra.mxu0 %v445
        %489 = vmatprep.subr.bf16.mxu0 %v444
        %490 = vmatpush1.bf16.msra.mxu0 %v443
        %491 = vmatprep.subr.bf16.mxu0 0
        %492 = vmatpush2.bf16.msra.mxu0 0
        %493 = vmatprep.subr.bf16.mxu0 0
        %494 = vmatpush2.bf16.msra.mxu0 0
        %495 = vmatprep.subr.bf16.mxu0 0
        %496 = vmatpush2.bf16.msra.mxu0 0
        %497 = vmatprep.subr.bf16.mxu0 0
        %498 = vmatpush2.bf16.msra.mxu0 0
        %499 = vmatprep.subr.bf16.mxu0 0
        %500 = vmatpush2.bf16.msra.mxu0 0
        %501 = vmatprep.subr.bf16.mxu0 0
        %502 = vmatpush2.bf16.msra.mxu0 0
        %503 = vmatprep.subr.bf16.mxu0 0
        %504 = vmatpush2.bf16.msra.mxu0 0
        %505 = vmatprep.subr.bf16.mxu0 0
        %506 = vmatpush2.bf16.msra.mxu0 0
        %507 = vmatprep.mubr.bf16.mxu0 0
        %508 = vmatmul.mubr.bf16.gmra.mxu0 %v366
        %v509 = vpop.f32.mrf.mxu0
        %v510 = vadd.f32 %v388, %v509
        %v511 = vpop.f32.mrf.mxu0
        %v512 = vadd.f32 %v392, %v511
        %v513 = vpop.f32.mrf.mxu0
        %v514 = vpop.f32.mrf.mxu0
        %515 = vdwg.mxu0
        %516 = vst [vmem:[%s251] sm:$0xff] %v510
        %517 = vst [vmem:[%s251 + $0x8] sm:$0xff] %v512
        %p518 = scmp.lt.s32.totalorder %s18, 1
        %s519 = scalar_select %p518, %s18, 1
        %s520 = smul.addr %s519, 2
        %s521 = smul.addr %s520, 8
        %s522 = scalar_lea.vmem %s5, %s521
        // Predicated region
        $region49: #{model_forward.1} parent=39 // pred_check
          %p523 = pneg %p146
        $region50: #{model_forward.1} parent=39 // pred_check_branch
          %525 = sbr.rel (%p523) target = $region52
        $region51: #{model_forward.1} parent=39 // pred_region
          _
        $region52: #{model_forward.1} parent=39 // pred_fallthru
          _
      $region40: #{model_forward.1} parent=5 // pred_fallthru
        _
      %p526 = scmp.le.s32.totalorder 2, %s13
      // Predicated region
      $region53: #{model_forward.1} parent=5 // pred_check
        %p527 = pneg %p526
      $region54: #{model_forward.1} parent=5 // pred_check_branch
        %529 = sbr.rel (%p527) target = $region56
      $region55: #{model_forward.1} parent=5 // pred_region
        %s530 = ssub.s32 %s13, 2
        // Predicated region
        $region57: #{model_forward.1} parent=55 // pred_check
          %p531 = pneg %p152
        $region58: #{model_forward.1} parent=55 // pred_check_branch
          %533 = sbr.rel (%p531) target = $region60
        $region59: #{model_forward.1} parent=55 // pred_region
          %p534 = scmp.lt.s32.totalorder %s19, 1
          %s535 = scalar_select %p534, %s19, 1
          %s536 = smul.addr %s535, 2
          %s537 = smul.addr %s536, 8
          %s538 = scalar_lea.vmem %s5, %s537
        $region60: #{model_forward.1} parent=55 // pred_fallthru
          _
      $region56: #{model_forward.1} parent=5 // pred_fallthru
        _
    $region6: #{model_forward.1} parent=1 // loop_footer
      %s17 = sadd.s32 1, %s13
    $region7: #{model_forward.1} parent=1 // loop_footer_branch
      %12 = sbr.rel target = $region3
    $region8: #{model_forward.1} parent=1 // loop_exit
      _
    %539 = vsyncpa [#allocation3], 1
    %s540 = scalar_lea.sflag [#allocation3], 1
    %541 = vsyncpa %s540, 1
    %542 = vsyncpa [#allocation5], 1

</llo_original>
